<compile_context>
chip_gen: v6e
topology: v6e:2x2x1
jax: 0.10.0
libtpu: 0.0.40
codegen_flags: <defaults>
</compile_context>

<pallas_src>
import jax
import jax.numpy as jnp
from jax import lax
from jax.experimental import pallas as pl
from jax.experimental.pallas import tpu as pltpu

H_IN, W_IN = 16, 16
K1H, K1W, P1 = 4, 4, 2
K2H, K2W, P2 = 6, 1, 0
C1_OUT = 2
C2_OUT = 2

# equivalent forward-conv paddings (stride = 1): q = k - 1 - p
Q1H, Q1W = K1H - 1 - P1, K1W - 1 - P1          # (1, 1)
Q2H, Q2W = K2H - 1 - P2, K2W - 1 - P2          # (5, 0)

# output spatial sizes
H1, W1 = H_IN + K1H - 1 - 2 * P1, W_IN + K1W - 1 - 2 * P1   # (15, 15)
H2, W2 = H1 + K2H - 1 - 2 * P2, W1 + K2W - 1 - 2 * P2       # (20, 15)

W_PACK1 = C1_OUT * W1            # 30 lanes: both v2 channels packed
W_PACK2 = C2_OUT * C1_OUT * W1   # 60 lanes: packed kernel output


def fused_kernel(x_ref, w1_ref, w2_ref, out_ref, xp_ref, v2p_ref):
    """x_ref:   (16, 16) VMEM  (one image, squeezed)
       w1_ref:  (32,) SMEM  raw ConvTranspose weights (1,2,4,4) flattened
       w2_ref:  (12,) SMEM  raw ConvTranspose weights (1,2,6,1) flattened
       out_ref: (20, 60) VMEM  packed output [o=0|ic=0,ic=1 ; o=1|ic=0,ic=1]
       xp_ref:  (24, 128) VMEM scratch  (zero-padded input)
       v2p_ref: (32, 128) VMEM scratch  (zero-padded, lane-packed v2)"""

    # Zero the padded scratch buffers only once (borders stay zero; the
    # interiors are overwritten every grid step below).
    @pl.when(pl.program_id(0) == 0)
    def _():
        xp_ref[...] = jnp.zeros_like(xp_ref)
        v2p_ref[...] = jnp.zeros_like(v2p_ref)

    # ---- padded input: interior written once into the aligned scratch ----
    xp_ref[Q1H:Q1H + H_IN, Q1W:Q1W + W_IN] = x_ref[...]

    # ---- conv_t1 as a regular conv (flip folded into static SMEM indices);
    #      each of the 16 tap slices is loaded once and shared by both
    #      output channels (tap-outer, channel-inner). ----
    acc0 = None
    acc1 = None
    for kh in range(K1H):
        for kw in range(K1W):
            tap = xp_ref[kh:kh + H1, kw:kw + W1]               # (15, 15)
            base = (K1H - 1 - kh) * K1W + (K1W - 1 - kw)
            wa = w1_ref[0 * K1H * K1W + base]
            wb = w1_ref[1 * K1H * K1W + base]
            t0 = wa * tap
            t1 = wb * tap
            acc0 = t0 if acc0 is None else acc0 + t0
            acc1 = t1 if acc1 is None else acc1 + t1

    # Pack both channels along lanes, then a single sigmoid on the packed value.
    v2_both = jax.nn.sigmoid(jnp.concatenate([acc0, acc1], axis=1))   # (15, 30)

    # ---- padded conv2 input: interior written once into the aligned scratch ----
    v2p_ref[Q2H:Q2H + H1, 0:W_PACK1] = v2_both

    # ---- conv_t2 (v2 channels treated as batch); the 6 sublane tap slices
    #      are loaded once and shared by both output channels. ----
    acc0 = None
    acc1 = None
    for kh in range(K2H):
        tap = v2p_ref[kh:kh + H2, 0:W_PACK1]                   # (20, 30)
        wa = w2_ref[0 * K2H + (K2H - 1 - kh)]
        wb = w2_ref[1 * K2H + (K2H - 1 - kh)]
        t0 = wa * tap
        t1 = wb * tap
        acc0 = t0 if acc0 is None else acc0 + t0
        acc1 = t1 if acc1 is None else acc1 + t1

    # Pack (20, 60), single sigmoid, single lane-dense store (no epilogue
    # slicing/stacking inside the kernel).
    out_ref[...] = jax.nn.sigmoid(jnp.concatenate([acc0, acc1], axis=1))


def model_forward(x, wt1, wt2):
    """x: (B,1,16,16) f32.  wt1: (1,2,4,4), wt2: (1,2,6,1) ConvTranspose weights
    in the PyTorch layout (C_in, C_out, kH, kW).  Returns (B, 4, 20, 15)."""
    B = x.shape[0]
    assert x.shape[1:] == (1, H_IN, W_IN)
    x2 = x.reshape(B, H_IN, W_IN)

    out_raw = pl.pallas_call(
        fused_kernel,
        out_shape=jax.ShapeDtypeStruct((B, H2, W_PACK2), jnp.float32),
        grid=(B,),
        in_specs=[
            pl.BlockSpec((None, H_IN, W_IN), lambda b: (b, 0, 0)),
            pl.BlockSpec(memory_space=pltpu.MemorySpace.SMEM),
            pl.BlockSpec(memory_space=pltpu.MemorySpace.SMEM),
        ],
        out_specs=pl.BlockSpec((None, H2, W_PACK2), lambda b: (b, 0, 0)),
        scratch_shapes=[
            pltpu.VMEM((24, 128), jnp.float32),   # padded input (18x18 used)
            pltpu.VMEM((32, 128), jnp.float32),   # padded packed v2 (25x30 used)
        ],
        compiler_params=pltpu.CompilerParams(dimension_semantics=("parallel",)),
    )(x2, wt1.reshape(-1), wt2.reshape(-1))

    # Wrapper-side de-interleave of the packed (H, 60) slab:
    # lanes = [o=0 | ic=0, ic=1][o=1 | ic=0, ic=1]; desired channel = ic*2 + o.
    out = (out_raw.reshape(B, H2, C2_OUT, C1_OUT, W1)
                  .transpose(0, 3, 2, 1, 4)
                  .reshape(B, C1_OUT * C2_OUT, H2, W2))
    return out


def reference_forward(x, wt1, wt2):
    """Pure-JAX reference (same channels-as-batch interpretation for conv2)."""
    B = x.shape[0]
    w1_conv = jnp.transpose(wt1, (1, 0, 2, 3))[:, :, ::-1, ::-1]
    w2_conv = jnp.transpose(wt2, (1, 0, 2, 3))[:, :, ::-1, ::-1]
    dn = ('NCHW', 'OIHW', 'NCHW')
    v1 = lax.conv_general_dilated(x, w1_conv, (1, 1),
                                  ((Q1H, Q1H), (Q1W, Q1W)), dimension_numbers=dn)
    v2 = jax.nn.sigmoid(v1)                                  # (B,2,15,15)
    v2b = v2.reshape(B * C1_OUT, 1, H1, W1)                  # channels -> batch
    v3 = lax.conv_general_dilated(v2b, w2_conv, (1, 1),
                                  ((Q2H, Q2H), (Q2W, Q2W)), dimension_numbers=dn)
    v4 = jax.nn.sigmoid(v3)                                  # (B*2,2,20,15)
    return v4.reshape(B, C1_OUT * C2_OUT, H2, W2)


if __name__ == "__main__":
    key = jax.random.PRNGKey(0)
    kx, k1, k2 = jax.random.split(key, 3)

    x1 = jax.random.normal(kx, (1, 1, H_IN, W_IN), dtype=jnp.float32)
    # deterministic ConvTranspose2d weights (PyTorch layout (C_in, C_out, kH, kW))
    wt1 = 0.1 * jax.random.normal(k1, (1, C1_OUT, K1H, K1W), dtype=jnp.float32)
    wt2 = 0.1 * jax.random.normal(k2, (1, C2_OUT, K2H, K2W), dtype=jnp.float32)

    out = jax.block_until_ready(model_forward(x1, wt1, wt2))
    ref = jax.block_until_ready(reference_forward(x1, wt1, wt2))

    assert out.shape == (1, C1_OUT * C2_OUT, H2, W2), out.shape
    assert jnp.allclose(out, ref, atol=1e-5, rtol=1e-5), "mismatch vs JAX reference"

    print("KERNEL_OK")
</pallas_src>

<mosaic_0001>
module attributes {stable_mosaic.version = 11 : i64} {
  func.func @fused_kernel(%arg0: i32, %arg1: memref<1x16x16xf32, #tpu.memory_space<vmem>>, %arg2: memref<32xf32, #tpu.memory_space<smem>>, %arg3: memref<12xf32, #tpu.memory_space<smem>>, %arg4: memref<1x20x60xf32, #tpu.memory_space<vmem>>, %arg5: memref<24x128xf32, #tpu.memory_space<vmem>>, %arg6: memref<32x128xf32, #tpu.memory_space<vmem>>) attributes {dimension_semantics = [#tpu.dimension_semantics<parallel>], iteration_bounds = array<i64: 1>, scalar_prefetch = 0 : i64, scratch_operands = 2 : i64, tpu.core_type = #tpu.core_type<tc>, window_params = [{transform_indices = @transform_0, window_bounds = array<i64: 1, 16, 16>}, {transform_indices = @transform_1, window_bounds = array<i64: 32>}, {transform_indices = @transform_2, window_bounds = array<i64: 12>}, {transform_indices = @transform_3, window_bounds = array<i64: 1, 20, 60>}]} {
    %c0_i32 = arith.constant 0 : i32
    %0 = arith.cmpi eq, %arg0, %c0_i32 : i32
    %1 = arith.extui %0 : i1 to i32
    %c0_i32_0 = arith.constant 0 : i32
    %2 = arith.cmpi ne, %1, %c0_i32_0 : i32
    scf.if %2 {
      %cst_68 = arith.constant 0.000000e+00 : f32
      %216 = vector.broadcast %cst_68 : f32 to vector<24x128xf32>
      %c0_69 = arith.constant 0 : index
      %c0_70 = arith.constant 0 : index
      %217 = vector.load %arg5[%c0_69, %c0_70] : memref<24x128xf32, #tpu.memory_space<vmem>>, vector<24x128xf32>
      tpu.vector_store %arg5[%c0_69, %c0_70], %216 {strides = array<i32>} : memref<24x128xf32, #tpu.memory_space<vmem>>, vector<24x128xf32>,
      %cst_71 = arith.constant 0.000000e+00 : f32
      %218 = vector.broadcast %cst_71 : f32 to vector<32x128xf32>
      %c0_72 = arith.constant 0 : index
      %c0_73 = arith.constant 0 : index
      %219 = vector.load %arg6[%c0_72, %c0_73] : memref<32x128xf32, #tpu.memory_space<vmem>>, vector<32x128xf32>
      tpu.vector_store %arg6[%c0_72, %c0_73], %218 {strides = array<i32>} : memref<32x128xf32, #tpu.memory_space<vmem>>, vector<32x128xf32>,
    } else {
    }
    %c0 = arith.constant 0 : index
    %c0_1 = arith.constant 0 : index
    %c0_2 = arith.constant 0 : index
    %3 = vector.load %arg1[%c0, %c0_1, %c0_2] : memref<1x16x16xf32, #tpu.memory_space<vmem>>, vector<1x16x16xf32>
    %4 = vector.shape_cast %3 : vector<1x16x16xf32> to vector<16x16xf32>
    %c1 = arith.constant 1 : index
    %c1_3 = arith.constant 1 : index
    %5 = vector.load %arg5[%c1, %c1_3] : memref<24x128xf32, #tpu.memory_space<vmem>>, vector<16x16xf32>
    tpu.vector_store %arg5[%c1, %c1_3], %4 {strides = array<i32>} : memref<24x128xf32, #tpu.memory_space<vmem>>, vector<16x16xf32>,
    %c0_4 = arith.constant 0 : index
    %c0_5 = arith.constant 0 : index
    %6 = vector.load %arg5[%c0_4, %c0_5] : memref<24x128xf32, #tpu.memory_space<vmem>>, vector<15x15xf32>
    %c15 = arith.constant 15 : index
    %7 = memref.load %arg2[%c15] : memref<32xf32, #tpu.memory_space<smem>>
    %c31 = arith.constant 31 : index
    %8 = memref.load %arg2[%c31] : memref<32xf32, #tpu.memory_space<smem>>
    %9 = vector.broadcast %7 : f32 to vector<15x15xf32>
    %10 = arith.mulf %9, %6 : vector<15x15xf32>
    %11 = vector.broadcast %8 : f32 to vector<15x15xf32>
    %12 = arith.mulf %11, %6 : vector<15x15xf32>
    %c0_6 = arith.constant 0 : index
    %c1_7 = arith.constant 1 : index
    %13 = vector.load %arg5[%c0_6, %c1_7] : memref<24x128xf32, #tpu.memory_space<vmem>>, vector<15x15xf32>
    %c14 = arith.constant 14 : index
    %14 = memref.load %arg2[%c14] : memref<32xf32, #tpu.memory_space<smem>>
    %c30 = arith.constant 30 : index
    %15 = memref.load %arg2[%c30] : memref<32xf32, #tpu.memory_space<smem>>
    %16 = vector.broadcast %14 : f32 to vector<15x15xf32>
    %17 = arith.mulf %16, %13 : vector<15x15xf32>
    %18 = vector.broadcast %15 : f32 to vector<15x15xf32>
    %19 = arith.mulf %18, %13 : vector<15x15xf32>
    %20 = arith.addf %10, %17 : vector<15x15xf32>
    %21 = arith.addf %12, %19 : vector<15x15xf32>
    %c0_8 = arith.constant 0 : index
    %c2 = arith.constant 2 : index
    %22 = vector.load %arg5[%c0_8, %c2] : memref<24x128xf32, #tpu.memory_space<vmem>>, vector<15x15xf32>
    %c13 = arith.constant 13 : index
    %23 = memref.load %arg2[%c13] : memref<32xf32, #tpu.memory_space<smem>>
    %c29 = arith.constant 29 : index
    %24 = memref.load %arg2[%c29] : memref<32xf32, #tpu.memory_space<smem>>
    %25 = vector.broadcast %23 : f32 to vector<15x15xf32>
    %26 = arith.mulf %25, %22 : vector<15x15xf32>
    %27 = vector.broadcast %24 : f32 to vector<15x15xf32>
    %28 = arith.mulf %27, %22 : vector<15x15xf32>
    %29 = arith.addf %20, %26 : vector<15x15xf32>
    %30 = arith.addf %21, %28 : vector<15x15xf32>
    %c0_9 = arith.constant 0 : index
    %c3 = arith.constant 3 : index
    %31 = vector.load %arg5[%c0_9, %c3] : memref<24x128xf32, #tpu.memory_space<vmem>>, vector<15x15xf32>
    %c12 = arith.constant 12 : index
    %32 = memref.load %arg2[%c12] : memref<32xf32, #tpu.memory_space<smem>>
    %c28 = arith.constant 28 : index
    %33 = memref.load %arg2[%c28] : memref<32xf32, #tpu.memory_space<smem>>
    %34 = vector.broadcast %32 : f32 to vector<15x15xf32>
    %35 = arith.mulf %34, %31 : vector<15x15xf32>
    %36 = vector.broadcast %33 : f32 to vector<15x15xf32>
    %37 = arith.mulf %36, %31 : vector<15x15xf32>
    %38 = arith.addf %29, %35 : vector<15x15xf32>
    %39 = arith.addf %30, %37 : vector<15x15xf32>
    %c1_10 = arith.constant 1 : index
    %c0_11 = arith.constant 0 : index
    %40 = vector.load %arg5[%c1_10, %c0_11] : memref<24x128xf32, #tpu.memory_space<vmem>>, vector<15x15xf32>
    %c11 = arith.constant 11 : index
    %41 = memref.load %arg2[%c11] : memref<32xf32, #tpu.memory_space<smem>>
    %c27 = arith.constant 27 : index
    %42 = memref.load %arg2[%c27] : memref<32xf32, #tpu.memory_space<smem>>
    %43 = vector.broadcast %41 : f32 to vector<15x15xf32>
    %44 = arith.mulf %43, %40 : vector<15x15xf32>
    %45 = vector.broadcast %42 : f32 to vector<15x15xf32>
    %46 = arith.mulf %45, %40 : vector<15x15xf32>
    %47 = arith.addf %38, %44 : vector<15x15xf32>
    %48 = arith.addf %39, %46 : vector<15x15xf32>
    %c1_12 = arith.constant 1 : index
    %c1_13 = arith.constant 1 : index
    %49 = vector.load %arg5[%c1_12, %c1_13] : memref<24x128xf32, #tpu.memory_space<vmem>>, vector<15x15xf32>
    %c10 = arith.constant 10 : index
    %50 = memref.load %arg2[%c10] : memref<32xf32, #tpu.memory_space<smem>>
    %c26 = arith.constant 26 : index
    %51 = memref.load %arg2[%c26] : memref<32xf32, #tpu.memory_space<smem>>
    %52 = vector.broadcast %50 : f32 to vector<15x15xf32>
    %53 = arith.mulf %52, %49 : vector<15x15xf32>
    %54 = vector.broadcast %51 : f32 to vector<15x15xf32>
    %55 = arith.mulf %54, %49 : vector<15x15xf32>
    %56 = arith.addf %47, %53 : vector<15x15xf32>
    %57 = arith.addf %48, %55 : vector<15x15xf32>
    %c1_14 = arith.constant 1 : index
    %c2_15 = arith.constant 2 : index
    %58 = vector.load %arg5[%c1_14, %c2_15] : memref<24x128xf32, #tpu.memory_space<vmem>>, vector<15x15xf32>
    %c9 = arith.constant 9 : index
    %59 = memref.load %arg2[%c9] : memref<32xf32, #tpu.memory_space<smem>>
    %c25 = arith.constant 25 : index
    %60 = memref.load %arg2[%c25] : memref<32xf32, #tpu.memory_space<smem>>
    %61 = vector.broadcast %59 : f32 to vector<15x15xf32>
    %62 = arith.mulf %61, %58 : vector<15x15xf32>
    %63 = vector.broadcast %60 : f32 to vector<15x15xf32>
    %64 = arith.mulf %63, %58 : vector<15x15xf32>
    %65 = arith.addf %56, %62 : vector<15x15xf32>
    %66 = arith.addf %57, %64 : vector<15x15xf32>
    %c1_16 = arith.constant 1 : index
    %c3_17 = arith.constant 3 : index
    %67 = vector.load %arg5[%c1_16, %c3_17] : memref<24x128xf32, #tpu.memory_space<vmem>>, vector<15x15xf32>
    %c8 = arith.constant 8 : index
    %68 = memref.load %arg2[%c8] : memref<32xf32, #tpu.memory_space<smem>>
    %c24 = arith.constant 24 : index
    %69 = memref.load %arg2[%c24] : memref<32xf32, #tpu.memory_space<smem>>
    %70 = vector.broadcast %68 : f32 to vector<15x15xf32>
    %71 = arith.mulf %70, %67 : vector<15x15xf32>
    %72 = vector.broadcast %69 : f32 to vector<15x15xf32>
    %73 = arith.mulf %72, %67 : vector<15x15xf32>
    %74 = arith.addf %65, %71 : vector<15x15xf32>
    %75 = arith.addf %66, %73 : vector<15x15xf32>
    %c2_18 = arith.constant 2 : index
    %c0_19 = arith.constant 0 : index
    %76 = vector.load %arg5[%c2_18, %c0_19] : memref<24x128xf32, #tpu.memory_space<vmem>>, vector<15x15xf32>
    %c7 = arith.constant 7 : index
    %77 = memref.load %arg2[%c7] : memref<32xf32, #tpu.memory_space<smem>>
    %c23 = arith.constant 23 : index
    %78 = memref.load %arg2[%c23] : memref<32xf32, #tpu.memory_space<smem>>
    %79 = vector.broadcast %77 : f32 to vector<15x15xf32>
    %80 = arith.mulf %79, %76 : vector<15x15xf32>
    %81 = vector.broadcast %78 : f32 to vector<15x15xf32>
    %82 = arith.mulf %81, %76 : vector<15x15xf32>
    %83 = arith.addf %74, %80 : vector<15x15xf32>
    %84 = arith.addf %75, %82 : vector<15x15xf32>
    %c2_20 = arith.constant 2 : index
    %c1_21 = arith.constant 1 : index
    %85 = vector.load %arg5[%c2_20, %c1_21] : memref<24x128xf32, #tpu.memory_space<vmem>>, vector<15x15xf32>
    %c6 = arith.constant 6 : index
    %86 = memref.load %arg2[%c6] : memref<32xf32, #tpu.memory_space<smem>>
    %c22 = arith.constant 22 : index
    %87 = memref.load %arg2[%c22] : memref<32xf32, #tpu.memory_space<smem>>
    %88 = vector.broadcast %86 : f32 to vector<15x15xf32>
    %89 = arith.mulf %88, %85 : vector<15x15xf32>
    %90 = vector.broadcast %87 : f32 to vector<15x15xf32>
    %91 = arith.mulf %90, %85 : vector<15x15xf32>
    %92 = arith.addf %83, %89 : vector<15x15xf32>
    %93 = arith.addf %84, %91 : vector<15x15xf32>
    %c2_22 = arith.constant 2 : index
    %c2_23 = arith.constant 2 : index
    %94 = vector.load %arg5[%c2_22, %c2_23] : memref<24x128xf32, #tpu.memory_space<vmem>>, vector<15x15xf32>
    %c5 = arith.constant 5 : index
    %95 = memref.load %arg2[%c5] : memref<32xf32, #tpu.memory_space<smem>>
    %c21 = arith.constant 21 : index
    %96 = memref.load %arg2[%c21] : memref<32xf32, #tpu.memory_space<smem>>
    %97 = vector.broadcast %95 : f32 to vector<15x15xf32>
    %98 = arith.mulf %97, %94 : vector<15x15xf32>
    %99 = vector.broadcast %96 : f32 to vector<15x15xf32>
    %100 = arith.mulf %99, %94 : vector<15x15xf32>
    %101 = arith.addf %92, %98 : vector<15x15xf32>
    %102 = arith.addf %93, %100 : vector<15x15xf32>
    %c2_24 = arith.constant 2 : index
    %c3_25 = arith.constant 3 : index
    %103 = vector.load %arg5[%c2_24, %c3_25] : memref<24x128xf32, #tpu.memory_space<vmem>>, vector<15x15xf32>
    %c4 = arith.constant 4 : index
    %104 = memref.load %arg2[%c4] : memref<32xf32, #tpu.memory_space<smem>>
    %c20 = arith.constant 20 : index
    %105 = memref.load %arg2[%c20] : memref<32xf32, #tpu.memory_space<smem>>
    %106 = vector.broadcast %104 : f32 to vector<15x15xf32>
    %107 = arith.mulf %106, %103 : vector<15x15xf32>
    %108 = vector.broadcast %105 : f32 to vector<15x15xf32>
    %109 = arith.mulf %108, %103 : vector<15x15xf32>
    %110 = arith.addf %101, %107 : vector<15x15xf32>
    %111 = arith.addf %102, %109 : vector<15x15xf32>
    %c3_26 = arith.constant 3 : index
    %c0_27 = arith.constant 0 : index
    %112 = vector.load %arg5[%c3_26, %c0_27] : memref<24x128xf32, #tpu.memory_space<vmem>>, vector<15x15xf32>
    %c3_28 = arith.constant 3 : index
    %113 = memref.load %arg2[%c3_28] : memref<32xf32, #tpu.memory_space<smem>>
    %c19 = arith.constant 19 : index
    %114 = memref.load %arg2[%c19] : memref<32xf32, #tpu.memory_space<smem>>
    %115 = vector.broadcast %113 : f32 to vector<15x15xf32>
    %116 = arith.mulf %115, %112 : vector<15x15xf32>
    %117 = vector.broadcast %114 : f32 to vector<15x15xf32>
    %118 = arith.mulf %117, %112 : vector<15x15xf32>
    %119 = arith.addf %110, %116 : vector<15x15xf32>
    %120 = arith.addf %111, %118 : vector<15x15xf32>
    %c3_29 = arith.constant 3 : index
    %c1_30 = arith.constant 1 : index
    %121 = vector.load %arg5[%c3_29, %c1_30] : memref<24x128xf32, #tpu.memory_space<vmem>>, vector<15x15xf32>
    %c2_31 = arith.constant 2 : index
    %122 = memref.load %arg2[%c2_31] : memref<32xf32, #tpu.memory_space<smem>>
    %c18 = arith.constant 18 : index
    %123 = memref.load %arg2[%c18] : memref<32xf32, #tpu.memory_space<smem>>
    %124 = vector.broadcast %122 : f32 to vector<15x15xf32>
    %125 = arith.mulf %124, %121 : vector<15x15xf32>
    %126 = vector.broadcast %123 : f32 to vector<15x15xf32>
    %127 = arith.mulf %126, %121 : vector<15x15xf32>
    %128 = arith.addf %119, %125 : vector<15x15xf32>
    %129 = arith.addf %120, %127 : vector<15x15xf32>
    %c3_32 = arith.constant 3 : index
    %c2_33 = arith.constant 2 : index
    %130 = vector.load %arg5[%c3_32, %c2_33] : memref<24x128xf32, #tpu.memory_space<vmem>>, vector<15x15xf32>
    %c1_34 = arith.constant 1 : index
    %131 = memref.load %arg2[%c1_34] : memref<32xf32, #tpu.memory_space<smem>>
    %c17 = arith.constant 17 : index
    %132 = memref.load %arg2[%c17] : memref<32xf32, #tpu.memory_space<smem>>
    %133 = vector.broadcast %131 : f32 to vector<15x15xf32>
    %134 = arith.mulf %133, %130 : vector<15x15xf32>
    %135 = vector.broadcast %132 : f32 to vector<15x15xf32>
    %136 = arith.mulf %135, %130 : vector<15x15xf32>
    %137 = arith.addf %128, %134 : vector<15x15xf32>
    %138 = arith.addf %129, %136 : vector<15x15xf32>
    %c3_35 = arith.constant 3 : index
    %c3_36 = arith.constant 3 : index
    %139 = vector.load %arg5[%c3_35, %c3_36] : memref<24x128xf32, #tpu.memory_space<vmem>>, vector<15x15xf32>
    %c0_37 = arith.constant 0 : index
    %140 = memref.load %arg2[%c0_37] : memref<32xf32, #tpu.memory_space<smem>>
    %c16 = arith.constant 16 : index
    %141 = memref.load %arg2[%c16] : memref<32xf32, #tpu.memory_space<smem>>
    %142 = vector.broadcast %140 : f32 to vector<15x15xf32>
    %143 = arith.mulf %142, %139 : vector<15x15xf32>
    %144 = vector.broadcast %141 : f32 to vector<15x15xf32>
    %145 = arith.mulf %144, %139 : vector<15x15xf32>
    %146 = arith.addf %137, %143 : vector<15x15xf32>
    %147 = arith.addf %138, %145 : vector<15x15xf32>
    %148 = tpu.concatenate %146, %147 in 1 : vector<15x15xf32>, vector<15x15xf32> -> vector<15x30xf32>
    %149 = arith.negf %148 : vector<15x30xf32>
    %150 = math.exp %149 : vector<15x30xf32>
    %cst = arith.constant 1.000000e+00 : f32
    %151 = vector.broadcast %cst : f32 to vector<15x30xf32>
    %152 = arith.addf %151, %150 : vector<15x30xf32>
    %153 = arith.divf %151, %152 : vector<15x30xf32>
    %c5_38 = arith.constant 5 : index
    %c0_39 = arith.constant 0 : index
    %154 = vector.load %arg6[%c5_38, %c0_39] : memref<32x128xf32, #tpu.memory_space<vmem>>, vector<15x30xf32>
    tpu.vector_store %arg6[%c5_38, %c0_39], %153 {strides = array<i32>} : memref<32x128xf32, #tpu.memory_space<vmem>>, vector<15x30xf32>,
    %c0_40 = arith.constant 0 : index
    %c0_41 = arith.constant 0 : index
    %155 = vector.load %arg6[%c0_40, %c0_41] : memref<32x128xf32, #tpu.memory_space<vmem>>, vector<20x30xf32>
    %c5_42 = arith.constant 5 : index
    %156 = memref.load %arg3[%c5_42] : memref<12xf32, #tpu.memory_space<smem>>
    %c11_43 = arith.constant 11 : index
    %157 = memref.load %arg3[%c11_43] : memref<12xf32, #tpu.memory_space<smem>>
    %158 = vector.broadcast %156 : f32 to vector<20x30xf32>
    %159 = arith.mulf %158, %155 : vector<20x30xf32>
    %160 = vector.broadcast %157 : f32 to vector<20x30xf32>
    %161 = arith.mulf %160, %155 : vector<20x30xf32>
    %c1_44 = arith.constant 1 : index
    %c0_45 = arith.constant 0 : index
    %162 = vector.load %arg6[%c1_44, %c0_45] : memref<32x128xf32, #tpu.memory_space<vmem>>, vector<20x30xf32>
    %c4_46 = arith.constant 4 : index
    %163 = memref.load %arg3[%c4_46] : memref<12xf32, #tpu.memory_space<smem>>
    %c10_47 = arith.constant 10 : index
    %164 = memref.load %arg3[%c10_47] : memref<12xf32, #tpu.memory_space<smem>>
    %165 = vector.broadcast %163 : f32 to vector<20x30xf32>
    %166 = arith.mulf %165, %162 : vector<20x30xf32>
    %167 = vector.broadcast %164 : f32 to vector<20x30xf32>
    %168 = arith.mulf %167, %162 : vector<20x30xf32>
    %169 = arith.addf %159, %166 : vector<20x30xf32>
    %170 = arith.addf %161, %168 : vector<20x30xf32>
    %c2_48 = arith.constant 2 : index
    %c0_49 = arith.constant 0 : index
    %171 = vector.load %arg6[%c2_48, %c0_49] : memref<32x128xf32, #tpu.memory_space<vmem>>, vector<20x30xf32>
    %c3_50 = arith.constant 3 : index
    %172 = memref.load %arg3[%c3_50] : memref<12xf32, #tpu.memory_space<smem>>
    %c9_51 = arith.constant 9 : index
    %173 = memref.load %arg3[%c9_51] : memref<12xf32, #tpu.memory_space<smem>>
    %174 = vector.broadcast %172 : f32 to vector<20x30xf32>
    %175 = arith.mulf %174, %171 : vector<20x30xf32>
    %176 = vector.broadcast %173 : f32 to vector<20x30xf32>
    %177 = arith.mulf %176, %171 : vector<20x30xf32>
    %178 = arith.addf %169, %175 : vector<20x30xf32>
    %179 = arith.addf %170, %177 : vector<20x30xf32>
    %c3_52 = arith.constant 3 : index
    %c0_53 = arith.constant 0 : index
    %180 = vector.load %arg6[%c3_52, %c0_53] : memref<32x128xf32, #tpu.memory_space<vmem>>, vector<20x30xf32>
    %c2_54 = arith.constant 2 : index
    %181 = memref.load %arg3[%c2_54] : memref<12xf32, #tpu.memory_space<smem>>
    %c8_55 = arith.constant 8 : index
    %182 = memref.load %arg3[%c8_55] : memref<12xf32, #tpu.memory_space<smem>>
    %183 = vector.broadcast %181 : f32 to vector<20x30xf32>
    %184 = arith.mulf %183, %180 : vector<20x30xf32>
    %185 = vector.broadcast %182 : f32 to vector<20x30xf32>
    %186 = arith.mulf %185, %180 : vector<20x30xf32>
    %187 = arith.addf %178, %184 : vector<20x30xf32>
    %188 = arith.addf %179, %186 : vector<20x30xf32>
    %c4_56 = arith.constant 4 : index
    %c0_57 = arith.constant 0 : index
    %189 = vector.load %arg6[%c4_56, %c0_57] : memref<32x128xf32, #tpu.memory_space<vmem>>, vector<20x30xf32>
    %c1_58 = arith.constant 1 : index
    %190 = memref.load %arg3[%c1_58] : memref<12xf32, #tpu.memory_space<smem>>
    %c7_59 = arith.constant 7 : index
    %191 = memref.load %arg3[%c7_59] : memref<12xf32, #tpu.memory_space<smem>>
    %192 = vector.broadcast %190 : f32 to vector<20x30xf32>
    %193 = arith.mulf %192, %189 : vector<20x30xf32>
    %194 = vector.broadcast %191 : f32 to vector<20x30xf32>
    %195 = arith.mulf %194, %189 : vector<20x30xf32>
    %196 = arith.addf %187, %193 : vector<20x30xf32>
    %197 = arith.addf %188, %195 : vector<20x30xf32>
    %c5_60 = arith.constant 5 : index
    %c0_61 = arith.constant 0 : index
    %198 = vector.load %arg6[%c5_60, %c0_61] : memref<32x128xf32, #tpu.memory_space<vmem>>, vector<20x30xf32>
    %c0_62 = arith.constant 0 : index
    %199 = memref.load %arg3[%c0_62] : memref<12xf32, #tpu.memory_space<smem>>
    %c6_63 = arith.constant 6 : index
    %200 = memref.load %arg3[%c6_63] : memref<12xf32, #tpu.memory_space<smem>>
    %201 = vector.broadcast %199 : f32 to vector<20x30xf32>
    %202 = arith.mulf %201, %198 : vector<20x30xf32>
    %203 = vector.broadcast %200 : f32 to vector<20x30xf32>
    %204 = arith.mulf %203, %198 : vector<20x30xf32>
    %205 = arith.addf %196, %202 : vector<20x30xf32>
    %206 = arith.addf %197, %204 : vector<20x30xf32>
    %207 = tpu.concatenate %205, %206 in 1 : vector<20x30xf32>, vector<20x30xf32> -> vector<20x60xf32>
    %208 = arith.negf %207 : vector<20x60xf32>
    %209 = math.exp %208 : vector<20x60xf32>
    %cst_64 = arith.constant 1.000000e+00 : f32
    %210 = vector.broadcast %cst_64 : f32 to vector<20x60xf32>
    %211 = arith.addf %210, %209 : vector<20x60xf32>
    %212 = arith.divf %210, %211 : vector<20x60xf32>
    %c0_65 = arith.constant 0 : index
    %c0_66 = arith.constant 0 : index
    %c0_67 = arith.constant 0 : index
    %213 = vector.load %arg4[%c0_65, %c0_66, %c0_67] : memref<1x20x60xf32, #tpu.memory_space<vmem>>, vector<1x20x60xf32>
    %214 = vector.shape_cast %213 : vector<1x20x60xf32> to vector<20x60xf32>
    %215 = vector.shape_cast %212 : vector<20x60xf32> to vector<1x20x60xf32>
    tpu.vector_store %arg4[%c0_65, %c0_66, %c0_67], %215 {strides = array<i32>} : memref<1x20x60xf32, #tpu.memory_space<vmem>>, vector<1x20x60xf32>,
    return
  }
  func.func @transform_0(%arg0: i32) -> (i32, i32, i32) {
    %c0_i32 = arith.constant 0 : i32
    %c0_i32_0 = arith.constant 0 : i32
    %c0_i32_1 = arith.constant 0 : i32
    return %arg0, %c0_i32, %c0_i32_0 : i32, i32, i32
  }
  func.func @transform_1(%arg0: i32) -> i32 {
    %c0_i32 = arith.constant 0 : i32
    %c0_i32_0 = arith.constant 0 : i32
    return %c0_i32 : i32
  }
  func.func @transform_2(%arg0: i32) -> i32 {
    %c0_i32 = arith.constant 0 : i32
    %c0_i32_0 = arith.constant 0 : i32
    return %c0_i32 : i32
  }
  func.func @transform_3(%arg0: i32) -> (i32, i32, i32) {
    %c0_i32 = arith.constant 0 : i32
    %c0_i32_0 = arith.constant 0 : i32
    %c0_i32_1 = arith.constant 0 : i32
    return %arg0, %c0_i32, %c0_i32_0 : i32, i32, i32
  }
}

</mosaic_0001>

<llo_original>
// kernel: tpu_custom_call.1
$region0: #{tpu_custom_call.1}
  #allocation0 [shape = 'u32[]', space=smem, size = 0x4, offset = 0x4, fixed_abs, tag = 'smem constant byte address 0x4 - core index']
  #allocation1 [shape = 'u32[144,128]{1,0:T(1,128)}', space=vmem, size = 0x12000, scoped, tag = 'internal scratch']
  #allocation2 [shape = 'f32[24,128]{1,0:T(8,128)}', space=vmem, size = 0x3000, scoped, tag = 'scratch operand']
  #allocation3 [shape = 'f32[32,128]{1,0:T(8,128)}', space=vmem, size = 0x4000, scoped, tag = 'scratch operand']
  %s0 = inlined_call_operand.hbm [shape: f32[1,16,16], index: 0, kind: input, shape index: {}]
  %s1 = inlined_call_operand.vmem [shape: f32[32], index: 1, kind: input, shape index: {}]
  %s2 = inlined_call_operand.vmem [shape: f32[12], index: 2, kind: input, shape index: {}]
  %s3 = inlined_call_operand.vmem [shape: f32[1,20,60], index: 3, kind: output, shape index: {}]
  %s4 = sld [smem:[#allocation0]]
  $region38: #{tpu_custom_call.1} parent=0
    _
  %s6 = ssub.s32 1, %s4
  %s7 = scalar_select 0, %s6, %s4
  $region1: #{tpu_custom_call.1} parent=0
    #allocation4 [shape = 'u8[8192]{0}', space=vmem, size = 0x2000, scoped, tag = 'input window, operand 0, single buffered']
    #allocation5 [shape = 's32[1]{0}', space=sflag, size = 0x4, scoped, tag = 'scoped memory for tpu_custom_call.1']
    #allocation6 [shape = 's32[1]{0}', space=sflag, size = 0x4, scoped, tag = 'scoped memory for tpu_custom_call.1']
    #allocation7 [shape = 'u8[512]{0}', space=smem, size = 0x200, scoped, tag = 'input window, operand 1, single buffered']
    #allocation8 [shape = 'u8[512]{0}', space=smem, size = 0x200, scoped, tag = 'input window, operand 2, single buffered']
    #allocation9 [shape = 's32[1]{0}', space=sflag, size = 0x4, scoped, tag = 'scoped memory for tpu_custom_call.1']
    %8 = vsyncpa [#allocation5], 0
    %9 = vsyncpa [#allocation6], 0
    %10 = vsyncpa [#allocation9], 0
    // Predicated region
    $region2: #{tpu_custom_call.1} parent=1 // pred_check
      _
    $region3: #{tpu_custom_call.1} parent=1 // pred_check_branch
      %12 = sbr.rel (0) target = $region5
    $region4: #{tpu_custom_call.1} parent=1 // pred_region
      %s14 = ssub.s32 256, 256
      %15 = vsyncadd [#allocation5], %s14
      %s16 = sshll.u32 [#allocation4], 4
      %s17 = int_to_ptr.vmem [resolvable:$true] %s16
      %22 = dma.hbm_to_vmem [thread:$0]  %s0, 256, %s17, [#allocation5], 128, 128, 8
    $region5: #{tpu_custom_call.1} parent=1 // pred_fallthru
      _
    // Predicated region
    $region6: #{tpu_custom_call.1} parent=1 // pred_check
      _
    $region7: #{tpu_custom_call.1} parent=1 // pred_check_branch
      %24 = sbr.rel (0) target = $region9
    $region8: #{tpu_custom_call.1} parent=1 // pred_region
      %s26 = ssub.s32 16, 16
      %27 = vsyncadd [#allocation6], %s26
      %s29 = sshll.u32 %s1, 4
      %s30 = int_to_ptr.vmem [resolvable:$true] %s29
      %32 = dma.vmem_to_smem %s30, 16, [#allocation7], [#allocation6]
    $region9: #{tpu_custom_call.1} parent=1 // pred_fallthru
      _
    // Predicated region
    $region10: #{tpu_custom_call.1} parent=1 // pred_check
      _
    $region11: #{tpu_custom_call.1} parent=1 // pred_check_branch
      %34 = sbr.rel (0) target = $region13
    $region12: #{tpu_custom_call.1} parent=1 // pred_region
      %s36 = ssub.s32 16, 16
      %37 = vsyncadd [#allocation9], %s36
      %s39 = sshll.u32 %s2, 4
      %s40 = int_to_ptr.vmem [resolvable:$true] %s39
      %42 = dma.vmem_to_smem %s40, 16, [#allocation8], [#allocation9]
    $region13: #{tpu_custom_call.1} parent=1 // pred_fallthru
      _
    // Predicated region
    $region14: #{tpu_custom_call.1} parent=1 // pred_check
      _
    $region15: #{tpu_custom_call.1} parent=1 // pred_check_branch
      %44 = sbr.rel (0) target = $region17
    $region16: #{tpu_custom_call.1} parent=1 // pred_region
      %45 = dma.done [#allocation5], 256
    $region17: #{tpu_custom_call.1} parent=1 // pred_fallthru
      _
    // Predicated region
    $region18: #{tpu_custom_call.1} parent=1 // pred_check
      _
    $region19: #{tpu_custom_call.1} parent=1 // pred_check_branch
      %47 = sbr.rel (0) target = $region21
    $region20: #{tpu_custom_call.1} parent=1 // pred_region
      %48 = dma.done [#allocation6], 16
    $region21: #{tpu_custom_call.1} parent=1 // pred_fallthru
      _
    // Predicated region
    $region22: #{tpu_custom_call.1} parent=1 // pred_check
      _
    $region23: #{tpu_custom_call.1} parent=1 // pred_check_branch
      %50 = sbr.rel (0) target = $region25
    $region24: #{tpu_custom_call.1} parent=1 // pred_region
      %51 = dma.done [#allocation9], 16
    $region25: #{tpu_custom_call.1} parent=1 // pred_fallthru
      _
    %52 = sfence
    %p53 = scmp.eq.s32.totalorder 0, 0
    // Predicated region
    $region26: #{tpu_custom_call.1} parent=1 // pred_check
      %p54 = pneg %p53
    $region27: #{tpu_custom_call.1} parent=1 // pred_check_branch
      %56 = sbr.rel (%p54) target = $region29
    $region28: #{tpu_custom_call.1} parent=1 // pred_region
      %57 = vst [vmem:[#allocation2] sm:$0xff] 0.0
      %58 = vst [vmem:[#allocation2 + $0x8] sm:$0xff] 0.0
      %59 = vst [vmem:[#allocation2 + $0x10] sm:$0xff] 0.0
      %60 = vst [vmem:[#allocation3] sm:$0xff] 0.0
      %61 = vst [vmem:[#allocation3 + $0x8] sm:$0xff] 0.0
      %62 = vst [vmem:[#allocation3 + $0x10] sm:$0xff] 0.0
      %63 = vst [vmem:[#allocation3 + $0x18] sm:$0xff] 0.0
    $region29: #{tpu_custom_call.1} parent=1 // pred_fallthru
      _
    %v64 = vld [vmem:[#allocation4] sm:$0xff]
    %v65 = vld [vmem:[#allocation4 + $0x8] sm:$0xff]
    %68 = vrot.lane.b32.xlu0 %v64, 1
    %v69 = vpop.permute.xlu0 %68
    %70 = vrot.lane.b32.xlu0 %v65, 1
    %v71 = vpop.permute.xlu0 %70
    %vm74 = vcmask 138248
    %75 = vst.msk [vmem:[#allocation2 + $0x1] sm:$0xff] %vm74, %v69
    %76 = vst.msk [vmem:[#allocation2 + $0x9] sm:$0xff] %vm74, %v71
    %v77 = vld [vmem:[#allocation2] sm:$0xff]
    %v78 = vld [vmem:[#allocation2 + $0x8] sm:$0x7f]
    %s79 = sld [smem:[#allocation7 + $0xf]]
    %s80 = sld [smem:[#allocation7 + $0x1f]]
    %v81 = vstv %s79
    %v82 = vmul.f32 %v81, %v77
    %v83 = vmul.f32 %v81, %v78
    %v84 = vstv %s80
    %v85 = vmul.f32 %v84, %v77
    %v86 = vmul.f32 %v84, %v78
    %s87 = sld [smem:[#allocation7 + $0xe]]
    %s88 = sld [smem:[#allocation7 + $0x1e]]
    %v89 = vstv %s87
    %v90 = vmul.f32 %v89, %v77
    %v91 = vmul.f32 %v89, %v78
    %v92 = vstv %s88
    %v93 = vmul.f32 %v92, %v77
    %v94 = vmul.f32 %v92, %v78
    %97 = vrot.lane.b32.xlu0 %v90, 127
    %v98 = vpop.permute.xlu0 %97
    %99 = vrot.lane.b32.xlu0 %v91, 127
    %v100 = vpop.permute.xlu0 %99
    %v103 = vadd.f32 %v82, %v98
    %v104 = vadd.f32 %v83, %v100
    %107 = vrot.lane.b32.xlu0 %v93, 127
    %v108 = vpop.permute.xlu0 %107
    %109 = vrot.lane.b32.xlu0 %v94, 127
    %v110 = vpop.permute.xlu0 %109
    %v113 = vadd.f32 %v85, %v108
    %v114 = vadd.f32 %v86, %v110
    %s115 = sld [smem:[#allocation7 + $0xd]]
    %s116 = sld [smem:[#allocation7 + $0x1d]]
    %v117 = vstv %s115
    %v118 = vmul.f32 %v117, %v77
    %v119 = vmul.f32 %v117, %v78
    %v120 = vstv %s116
    %v121 = vmul.f32 %v120, %v77
    %v122 = vmul.f32 %v120, %v78
    %125 = vrot.lane.b32.xlu0 %v118, 126
    %v126 = vpop.permute.xlu0 %125
    %127 = vrot.lane.b32.xlu0 %v119, 126
    %v128 = vpop.permute.xlu0 %127
    %v131 = vadd.f32 %v103, %v126
    %v132 = vadd.f32 %v104, %v128
    %135 = vrot.lane.b32.xlu0 %v121, 126
    %v136 = vpop.permute.xlu0 %135
    %137 = vrot.lane.b32.xlu0 %v122, 126
    %v138 = vpop.permute.xlu0 %137
    %v141 = vadd.f32 %v113, %v136
    %v142 = vadd.f32 %v114, %v138
    %s143 = sld [smem:[#allocation7 + $0xc]]
    %s144 = sld [smem:[#allocation7 + $0x1c]]
    %v145 = vstv %s143
    %v146 = vmul.f32 %v145, %v77
    %v147 = vmul.f32 %v145, %v78
    %v148 = vstv %s144
    %v149 = vmul.f32 %v148, %v77
    %v150 = vmul.f32 %v148, %v78
    %153 = vrot.lane.b32.xlu0 %v146, 125
    %v154 = vpop.permute.xlu0 %153
    %155 = vrot.lane.b32.xlu0 %v147, 125
    %v156 = vpop.permute.xlu0 %155
    %v159 = vadd.f32 %v131, %v154
    %v160 = vadd.f32 %v132, %v156
    %163 = vrot.lane.b32.xlu0 %v149, 125
    %v164 = vpop.permute.xlu0 %163
    %165 = vrot.lane.b32.xlu0 %v150, 125
    %v166 = vpop.permute.xlu0 %165
    %v169 = vadd.f32 %v141, %v164
    %v170 = vadd.f32 %v142, %v166
    %v171 = vld [vmem:[#allocation2 + $0x1] sm:$0xff]
    %v172 = vld [vmem:[#allocation2 + $0x9] sm:$0x7f]
    %s173 = sld [smem:[#allocation7 + $0xb]]
    %s174 = sld [smem:[#allocation7 + $0x1b]]
    %v175 = vstv %s173
    %v176 = vmul.f32 %v175, %v171
    %v177 = vmul.f32 %v175, %v172
    %v178 = vstv %s174
    %v179 = vmul.f32 %v178, %v171
    %v180 = vmul.f32 %v178, %v172
    %v181 = vadd.f32 %v159, %v176
    %v182 = vadd.f32 %v160, %v177
    %v183 = vadd.f32 %v169, %v179
    %v184 = vadd.f32 %v170, %v180
    %s185 = sld [smem:[#allocation7 + $0xa]]
    %s186 = sld [smem:[#allocation7 + $0x1a]]
    %v187 = vstv %s185
    %v188 = vmul.f32 %v187, %v171
    %v189 = vmul.f32 %v187, %v172
    %v190 = vstv %s186
    %v191 = vmul.f32 %v190, %v171
    %v192 = vmul.f32 %v190, %v172
    %195 = vrot.lane.b32.xlu0 %v188, 127
    %v196 = vpop.permute.xlu0 %195
    %197 = vrot.lane.b32.xlu0 %v189, 127
    %v198 = vpop.permute.xlu0 %197
    %v201 = vadd.f32 %v181, %v196
    %v202 = vadd.f32 %v182, %v198
    %205 = vrot.lane.b32.xlu0 %v191, 127
    %v206 = vpop.permute.xlu0 %205
    %207 = vrot.lane.b32.xlu0 %v192, 127
    %v208 = vpop.permute.xlu0 %207
    %v211 = vadd.f32 %v183, %v206
    %v212 = vadd.f32 %v184, %v208
    %s213 = sld [smem:[#allocation7 + $0x9]]
    %s214 = sld [smem:[#allocation7 + $0x19]]
    %v215 = vstv %s213
    %v216 = vmul.f32 %v215, %v171
    %v217 = vmul.f32 %v215, %v172
    %v218 = vstv %s214
    %v219 = vmul.f32 %v218, %v171
    %v220 = vmul.f32 %v218, %v172
    %223 = vrot.lane.b32.xlu0 %v216, 126
    %v224 = vpop.permute.xlu0 %223
    %225 = vrot.lane.b32.xlu0 %v217, 126
    %v226 = vpop.permute.xlu0 %225
    %v229 = vadd.f32 %v201, %v224
    %v230 = vadd.f32 %v202, %v226
    %233 = vrot.lane.b32.xlu0 %v219, 126
    %v234 = vpop.permute.xlu0 %233
    %235 = vrot.lane.b32.xlu0 %v220, 126
    %v236 = vpop.permute.xlu0 %235
    %v239 = vadd.f32 %v211, %v234
    %v240 = vadd.f32 %v212, %v236
    %s241 = sld [smem:[#allocation7 + $0x8]]
    %s242 = sld [smem:[#allocation7 + $0x18]]
    %v243 = vstv %s241
    %v244 = vmul.f32 %v243, %v171
    %v245 = vmul.f32 %v243, %v172
    %v246 = vstv %s242
    %v247 = vmul.f32 %v246, %v171
    %v248 = vmul.f32 %v246, %v172
    %251 = vrot.lane.b32.xlu0 %v244, 125
    %v252 = vpop.permute.xlu0 %251
    %253 = vrot.lane.b32.xlu0 %v245, 125
    %v254 = vpop.permute.xlu0 %253
    %v257 = vadd.f32 %v229, %v252
    %v258 = vadd.f32 %v230, %v254
    %261 = vrot.lane.b32.xlu0 %v247, 125
    %v262 = vpop.permute.xlu0 %261
    %263 = vrot.lane.b32.xlu0 %v248, 125
    %v264 = vpop.permute.xlu0 %263
    %v267 = vadd.f32 %v239, %v262
    %v268 = vadd.f32 %v240, %v264
    %v269 = vld [vmem:[#allocation2 + $0x2] sm:$0xff]
    %v270 = vld [vmem:[#allocation2 + $0xa] sm:$0x7f]
    %s271 = sld [smem:[#allocation7 + $0x7]]
    %s272 = sld [smem:[#allocation7 + $0x17]]
    %v273 = vstv %s271
    %v274 = vmul.f32 %v273, %v269
    %v275 = vmul.f32 %v273, %v270
    %v276 = vstv %s272
    %v277 = vmul.f32 %v276, %v269
    %v278 = vmul.f32 %v276, %v270
    %v279 = vadd.f32 %v257, %v274
    %v280 = vadd.f32 %v258, %v275
    %v281 = vadd.f32 %v267, %v277
    %v282 = vadd.f32 %v268, %v278
    %s283 = sld [smem:[#allocation7 + $0x6]]
    %s284 = sld [smem:[#allocation7 + $0x16]]
    %v285 = vstv %s283
    %v286 = vmul.f32 %v285, %v269
    %v287 = vmul.f32 %v285, %v270
    %v288 = vstv %s284
    %v289 = vmul.f32 %v288, %v269
    %v290 = vmul.f32 %v288, %v270
    %293 = vrot.lane.b32.xlu0 %v286, 127
    %v294 = vpop.permute.xlu0 %293
    %295 = vrot.lane.b32.xlu0 %v287, 127
    %v296 = vpop.permute.xlu0 %295
    %v299 = vadd.f32 %v279, %v294
    %v300 = vadd.f32 %v280, %v296
    %303 = vrot.lane.b32.xlu0 %v289, 127
    %v304 = vpop.permute.xlu0 %303
    %305 = vrot.lane.b32.xlu0 %v290, 127
    %v306 = vpop.permute.xlu0 %305
    %v309 = vadd.f32 %v281, %v304
    %v310 = vadd.f32 %v282, %v306
    %s311 = sld [smem:[#allocation7 + $0x5]]
    %s312 = sld [smem:[#allocation7 + $0x15]]
    %v313 = vstv %s311
    %v314 = vmul.f32 %v313, %v269
    %v315 = vmul.f32 %v313, %v270
    %v316 = vstv %s312
    %v317 = vmul.f32 %v316, %v269
    %v318 = vmul.f32 %v316, %v270
    %321 = vrot.lane.b32.xlu0 %v314, 126
    %v322 = vpop.permute.xlu0 %321
    %323 = vrot.lane.b32.xlu0 %v315, 126
    %v324 = vpop.permute.xlu0 %323
    %v327 = vadd.f32 %v299, %v322
    %v328 = vadd.f32 %v300, %v324
    %331 = vrot.lane.b32.xlu0 %v317, 126
    %v332 = vpop.permute.xlu0 %331
    %333 = vrot.lane.b32.xlu0 %v318, 126
    %v334 = vpop.permute.xlu0 %333
    %v337 = vadd.f32 %v309, %v332
    %v338 = vadd.f32 %v310, %v334
    %s339 = sld [smem:[#allocation7 + $0x4]]
    %s340 = sld [smem:[#allocation7 + $0x14]]
    %v341 = vstv %s339
    %v342 = vmul.f32 %v341, %v269
    %v343 = vmul.f32 %v341, %v270
    %v344 = vstv %s340
    %v345 = vmul.f32 %v344, %v269
    %v346 = vmul.f32 %v344, %v270
    %349 = vrot.lane.b32.xlu0 %v342, 125
    %v350 = vpop.permute.xlu0 %349
    %351 = vrot.lane.b32.xlu0 %v343, 125
    %v352 = vpop.permute.xlu0 %351
    %v355 = vadd.f32 %v327, %v350
    %v356 = vadd.f32 %v328, %v352
    %359 = vrot.lane.b32.xlu0 %v345, 125
    %v360 = vpop.permute.xlu0 %359
    %361 = vrot.lane.b32.xlu0 %v346, 125
    %v362 = vpop.permute.xlu0 %361
    %v365 = vadd.f32 %v337, %v360
    %v366 = vadd.f32 %v338, %v362
    %v367 = vld [vmem:[#allocation2 + $0x3] sm:$0xff]
    %v368 = vld [vmem:[#allocation2 + $0xb] sm:$0x7f]
    %s369 = sld [smem:[#allocation7 + $0x3]]
    %s370 = sld [smem:[#allocation7 + $0x13]]
    %v371 = vstv %s369
    %v372 = vmul.f32 %v371, %v367
    %v373 = vmul.f32 %v371, %v368
    %v374 = vstv %s370
    %v375 = vmul.f32 %v374, %v367
    %v376 = vmul.f32 %v374, %v368
    %v377 = vadd.f32 %v355, %v372
    %v378 = vadd.f32 %v356, %v373
    %v379 = vadd.f32 %v365, %v375
    %v380 = vadd.f32 %v366, %v376
    %s381 = sld [smem:[#allocation7 + $0x2]]
    %s382 = sld [smem:[#allocation7 + $0x12]]
    %v383 = vstv %s381
    %v384 = vmul.f32 %v383, %v367
    %v385 = vmul.f32 %v383, %v368
    %v386 = vstv %s382
    %v387 = vmul.f32 %v386, %v367
    %v388 = vmul.f32 %v386, %v368
    %391 = vrot.lane.b32.xlu0 %v384, 127
    %v392 = vpop.permute.xlu0 %391
    %393 = vrot.lane.b32.xlu0 %v385, 127
    %v394 = vpop.permute.xlu0 %393
    %v397 = vadd.f32 %v377, %v392
    %v398 = vadd.f32 %v378, %v394
    %401 = vrot.lane.b32.xlu0 %v387, 127
    %v402 = vpop.permute.xlu0 %401
    %403 = vrot.lane.b32.xlu0 %v388, 127
    %v404 = vpop.permute.xlu0 %403
    %v407 = vadd.f32 %v379, %v402
    %v408 = vadd.f32 %v380, %v404
    %s409 = sld [smem:[#allocation7 + $0x1]]
    %s410 = sld [smem:[#allocation7 + $0x11]]
    %v411 = vstv %s409
    %v412 = vmul.f32 %v411, %v367
    %v413 = vmul.f32 %v411, %v368
    %v414 = vstv %s410
    %v415 = vmul.f32 %v414, %v367
    %v416 = vmul.f32 %v414, %v368
    %419 = vrot.lane.b32.xlu0 %v412, 126
    %v420 = vpop.permute.xlu0 %419
    %421 = vrot.lane.b32.xlu0 %v413, 126
    %v422 = vpop.permute.xlu0 %421
    %v425 = vadd.f32 %v397, %v420
    %v426 = vadd.f32 %v398, %v422
    %429 = vrot.lane.b32.xlu0 %v415, 126
    %v430 = vpop.permute.xlu0 %429
    %431 = vrot.lane.b32.xlu0 %v416, 126
    %v432 = vpop.permute.xlu0 %431
    %v435 = vadd.f32 %v407, %v430
    %v436 = vadd.f32 %v408, %v432
    %s437 = sld [smem:[#allocation7]]
    %s438 = sld [smem:[#allocation7 + $0x10]]
    %v439 = vstv %s437
    %v440 = vmul.f32 %v439, %v367
    %v441 = vmul.f32 %v439, %v368
    %v442 = vstv %s438
    %v443 = vmul.f32 %v442, %v367
    %v444 = vmul.f32 %v442, %v368
    %447 = vrot.lane.b32.xlu0 %v440, 125
    %v448 = vpop.permute.xlu0 %447
    %449 = vrot.lane.b32.xlu0 %v441, 125
    %v450 = vpop.permute.xlu0 %449
    %v453 = vadd.f32 %v425, %v448
    %v454 = vadd.f32 %v426, %v450
    %457 = vrot.lane.b32.xlu0 %v443, 125
    %v458 = vpop.permute.xlu0 %457
    %459 = vrot.lane.b32.xlu0 %v444, 125
    %v460 = vpop.permute.xlu0 %459
    %v463 = vadd.f32 %v435, %v458
    %v464 = vadd.f32 %v436, %v460
    %467 = vrot.lane.b32.xlu0 %v463, 15
    %v468 = vpop.permute.xlu0 %467
    %469 = vrot.lane.b32.xlu0 %v464, 15
    %v470 = vpop.permute.xlu0 %469
    %vm473 = vcmask 121856
    %v474 = vsel %vm473, %v453, %v468
    %v475 = vsel %vm473, %v454, %v470
    %v476 = vxor.u32 %v474, 2147483648
    %v477 = vxor.u32 %v475, 2147483648
    %v478 = vmul.f32 %v476, 1.442695
    %v479 = vpow.pop %v478
    %v480 = vmul.f32 %v477, 1.442695
    %v481 = vpow.pop %v480
    %v482 = vadd.f32 %v479, 1.0
    %v483 = vadd.f32 %v481, 1.0
    %v484 = vrcp.pop %v482
    %v485 = vmul.f32 1.0, %v484
    %v486 = vrcp.pop %v483
    %v487 = vmul.f32 1.0, %v486
    %vm488 = vcmask 244736
    %489 = vst.msk [vmem:[#allocation3 + $0x5] sm:$0xff] %vm488, %v485
    %vm490 = vcmask 243712
    %491 = vst.msk [vmem:[#allocation3 + $0xd] sm:$0x7f] %vm490, %v487
    %v492 = vld [vmem:[#allocation3] sm:$0xff]
    %v493 = vld [vmem:[#allocation3 + $0x8] sm:$0xff]
    %v494 = vld [vmem:[#allocation3 + $0x10] sm:$0xf]
    %s495 = sld [smem:[#allocation8 + $0x5]]
    %s496 = sld [smem:[#allocation8 + $0xb]]
    %v497 = vstv %s495
    %v498 = vmul.f32 %v497, %v492
    %v499 = vmul.f32 %v497, %v493
    %v500 = vmul.f32 %v497, %v494
    %v501 = vstv %s496
    %v502 = vmul.f32 %v501, %v492
    %v503 = vmul.f32 %v501, %v493
    %v504 = vmul.f32 %v501, %v494
    %v505 = vld [vmem:[#allocation3 + $0x1] sm:$0xff]
    %v506 = vld [vmem:[#allocation3 + $0x9] sm:$0xff]
    %v507 = vld [vmem:[#allocation3 + $0x11] sm:$0xf]
    %s508 = sld [smem:[#allocation8 + $0x4]]
    %s509 = sld [smem:[#allocation8 + $0xa]]
    %v510 = vstv %s508
    %v511 = vmul.f32 %v510, %v505
    %v512 = vmul.f32 %v510, %v506
    %v513 = vmul.f32 %v510, %v507
    %v514 = vstv %s509
    %v515 = vmul.f32 %v514, %v505
    %v516 = vmul.f32 %v514, %v506
    %v517 = vmul.f32 %v514, %v507
    %v518 = vadd.f32 %v498, %v511
    %v519 = vadd.f32 %v499, %v512
    %v520 = vadd.f32 %v500, %v513
    %v521 = vadd.f32 %v502, %v515
    %v522 = vadd.f32 %v503, %v516
    %v523 = vadd.f32 %v504, %v517
    %v524 = vld [vmem:[#allocation3 + $0x2] sm:$0xff]
    %v525 = vld [vmem:[#allocation3 + $0xa] sm:$0xff]
    %v526 = vld [vmem:[#allocation3 + $0x12] sm:$0xf]
    %s527 = sld [smem:[#allocation8 + $0x3]]
    %s528 = sld [smem:[#allocation8 + $0x9]]
    %v529 = vstv %s527
    %v530 = vmul.f32 %v529, %v524
    %v531 = vmul.f32 %v529, %v525
    %v532 = vmul.f32 %v529, %v526
    %v533 = vstv %s528
    %v534 = vmul.f32 %v533, %v524
    %v535 = vmul.f32 %v533, %v525
    %v536 = vmul.f32 %v533, %v526
    %v537 = vadd.f32 %v518, %v530
    %v538 = vadd.f32 %v519, %v531
    %v539 = vadd.f32 %v520, %v532
    %v540 = vadd.f32 %v521, %v534
    %v541 = vadd.f32 %v522, %v535
    %v542 = vadd.f32 %v523, %v536
    %v543 = vld [vmem:[#allocation3 + $0x3] sm:$0xff]
    %v544 = vld [vmem:[#allocation3 + $0xb] sm:$0xff]
    %v545 = vld [vmem:[#allocation3 + $0x13] sm:$0xf]
    %s546 = sld [smem:[#allocation8 + $0x2]]
    %s547 = sld [smem:[#allocation8 + $0x8]]
    %v548 = vstv %s546
    %v549 = vmul.f32 %v548, %v543
    %v550 = vmul.f32 %v548, %v544
    %v551 = vmul.f32 %v548, %v545
    %v552 = vstv %s547
    %v553 = vmul.f32 %v552, %v543
    %v554 = vmul.f32 %v552, %v544
    %v555 = vmul.f32 %v552, %v545
    %v556 = vadd.f32 %v537, %v549
    %v557 = vadd.f32 %v538, %v550
    %v558 = vadd.f32 %v539, %v551
    %v559 = vadd.f32 %v540, %v553
    %v560 = vadd.f32 %v541, %v554
    %v561 = vadd.f32 %v542, %v555
    %v562 = vld [vmem:[#allocation3 + $0x4] sm:$0xff]
    %v563 = vld [vmem:[#allocation3 + $0xc] sm:$0xff]
    %v564 = vld [vmem:[#allocation3 + $0x14] sm:$0xf]
    %s565 = sld [smem:[#allocation8 + $0x1]]
    %s566 = sld [smem:[#allocation8 + $0x7]]
    %v567 = vstv %s565
    %v568 = vmul.f32 %v567, %v562
    %v569 = vmul.f32 %v567, %v563
    %v570 = vmul.f32 %v567, %v564
    %v571 = vstv %s566
    %v572 = vmul.f32 %v571, %v562
    %v573 = vmul.f32 %v571, %v563
    %v574 = vmul.f32 %v571, %v564
    %v575 = vadd.f32 %v556, %v568
    %v576 = vadd.f32 %v557, %v569
    %v577 = vadd.f32 %v558, %v570
    %v578 = vadd.f32 %v559, %v572
    %v579 = vadd.f32 %v560, %v573
    %v580 = vadd.f32 %v561, %v574
    %v581 = vld [vmem:[#allocation3 + $0x5] sm:$0xff]
    %v582 = vld [vmem:[#allocation3 + $0xd] sm:$0xff]
    %v583 = vld [vmem:[#allocation3 + $0x15] sm:$0xf]
    %s584 = sld [smem:[#allocation8]]
    %s585 = sld [smem:[#allocation8 + $0x6]]
    %v586 = vstv %s584
    %v587 = vmul.f32 %v586, %v581
    %v588 = vmul.f32 %v586, %v582
    %v589 = vmul.f32 %v586, %v583
    %v590 = vstv %s585
    %v591 = vmul.f32 %v590, %v581
    %v592 = vmul.f32 %v590, %v582
    %v593 = vmul.f32 %v590, %v583
    %v594 = vadd.f32 %v575, %v587
    %v595 = vadd.f32 %v576, %v588
    %v596 = vadd.f32 %v577, %v589
    %v597 = vadd.f32 %v578, %v591
    %v598 = vadd.f32 %v579, %v592
    %v599 = vadd.f32 %v580, %v593
    %603 = vrot.lane.b32.xlu0 %v597, 30
    %v604 = vpop.permute.xlu0 %603
    %605 = vrot.lane.b32.xlu0 %v598, 30
    %v606 = vpop.permute.xlu0 %605
    %607 = vrot.lane.b32.xlu0 %v599, 30
    %v608 = vpop.permute.xlu0 %607
    %v612 = vsel %vm488, %v594, %v604
    %v613 = vsel %vm488, %v595, %v606
    %v614 = vsel %vm488, %v596, %v608
    %v615 = vxor.u32 %v612, 2147483648
    %v616 = vxor.u32 %v613, 2147483648
    %v617 = vxor.u32 %v614, 2147483648
    %v618 = vmul.f32 %v615, 1.442695
    %v619 = vpow.pop %v618
    %v620 = vmul.f32 %v616, 1.442695
    %v621 = vpow.pop %v620
    %v622 = vmul.f32 %v617, 1.442695
    %v623 = vpow.pop %v622
    %v624 = vadd.f32 %v619, 1.0
    %v625 = vadd.f32 %v621, 1.0
    %v626 = vadd.f32 %v623, 1.0
    %v627 = vrcp.pop %v624
    %v628 = vmul.f32 1.0, %v627
    %v629 = vrcp.pop %v625
    %v630 = vmul.f32 1.0, %v629
    %v631 = vrcp.pop %v626
    %v632 = vmul.f32 1.0, %v631
    %vm633 = vcmask 490496
    %634 = vst.msk [vmem:[%s3] sm:$0xff] %vm633, %v628
    %635 = vst.msk [vmem:[%s3 + $0x8] sm:$0xff] %vm633, %v630
    %vm636 = vcmask 486400
    %637 = vst.msk [vmem:[%s3 + $0x10] sm:$0xf] %vm636, %v632
    // Predicated region
    $region30: #{tpu_custom_call.1} parent=1 // pred_check
      _
    $region31: #{tpu_custom_call.1} parent=1 // pred_check_branch
      %639 = sbr.rel (0) target = $region33
    $region32: #{tpu_custom_call.1} parent=1 // pred_region
      _
    $region33: #{tpu_custom_call.1} parent=1 // pred_fallthru
      _
    // Predicated region
    $region34: #{tpu_custom_call.1} parent=1 // pred_check
      _
    $region35: #{tpu_custom_call.1} parent=1 // pred_check_branch
      %641 = sbr.rel (0) target = $region37
    $region36: #{tpu_custom_call.1} parent=1 // pred_region
      _
    $region37: #{tpu_custom_call.1} parent=1 // pred_fallthru
      _
    %642 = vsyncpa [#allocation5], 1
    %643 = vsyncpa [#allocation6], 1
    %644 = vsyncpa [#allocation9], 1

</llo_original>
